<compile_context>
chip_gen: v7x
topology: tpu7x:2x2x1
jax: 0.10.0
libtpu: 0.0.40
codegen_flags: <defaults>
</compile_context>

<pallas_src>
import functools
import math

import jax
import jax.numpy as jnp
from jax.experimental import pallas as pl
from jax.experimental.pallas import tpu as pltpu


# --------------------------------------------------------------------------------------
# Kernel (online-softmax attention, one (batch-block, Q-tile) owns the K grid axis)
# --------------------------------------------------------------------------------------
def _attn_kernel(*refs, scale, apply_mask, return_weights, softmax_dtype):
    i = 0
    vl_ref = None
    if apply_mask:
        vl_ref = refs[i]
        i += 1
    q_ref, k_ref, v_ref = refs[i], refs[i + 1], refs[i + 2]
    i += 3
    o_ref = refs[i]
    i += 1
    w_ref = None
    if return_weights:
        w_ref = refs[i]
        i += 1
    m_sc, l_sc, acc_sc = refs[i], refs[i + 1], refs[i + 2]

    ki = pl.program_id(2)

    @pl.when(ki == 0)
    def _init():
        m_sc[...] = jnp.full_like(m_sc, -jnp.inf)
        l_sc[...] = jnp.zeros_like(l_sc)
        acc_sc[...] = jnp.zeros_like(acc_sc)

    q = q_ref[...]                       # (Bb, TQ, D)  matmul dtype (cast in wrapper)
    k = k_ref[...]                       # (Bb, TK, D)
    v = v_ref[...]                       # (Bb, TK, V)

    # Fold 1/sqrt(D) into Q: Bb*TQ*D multiplies instead of Bb*TQ*TK on the scores.
    qs = q * scale

    # scores = Q @ K^T, contracting over D directly (no materialized transpose).
    s = jax.lax.dot_general(
        qs, k,
        dimension_numbers=(((2,), (2,)), ((0,), (0,))),
        preferred_element_type=jnp.float32)                       # (Bb, TQ, TK) f32

    if apply_mask:
        vl = vl_ref[...]                                          # (Bb, 1, 1) int32
        col = jax.lax.broadcasted_iota(jnp.int32, s.shape, dimension=2) + ki * s.shape[2]
        s = jnp.where(col < vl, s, jnp.float32(-1000000.0))

    # Online (flash) softmax update: running max / denominator stay f32; the exp /
    # probability tensor uses `softmax_dtype` (bf16 on v6e/v7x, f32 otherwise).
    m_prev = m_sc[...]
    m_new = jnp.maximum(m_prev, jnp.max(s, axis=-1, keepdims=True))
    alpha = jnp.exp(m_prev - m_new)                               # f32 (Bb, TQ, 1)
    p = jnp.exp((s - m_new).astype(softmax_dtype))                # (Bb, TQ, TK)
    l_sc[...] = alpha * l_sc[...] + jnp.sum(p.astype(jnp.float32), axis=-1, keepdims=True)
    pv = jax.lax.dot_general(
        p.astype(v.dtype), v,
        dimension_numbers=(((2,), (1,)), ((0,), (0,))),
        preferred_element_type=jnp.float32)                       # (Bb, TQ, V) f32
    acc_sc[...] = alpha * acc_sc[...] + pv
    m_sc[...] = m_new

    @pl.when(ki == pl.num_programs(2) - 1)
    def _finalize():
        denom = l_sc[...]
        # EUP approximate reciprocal + one Newton step: f32 accuracy off the VALU
        # divide path.
        r = pl.reciprocal(denom, approx=True)
        r = r * (jnp.float32(2.0) - denom * r)
        o_ref[...] = (acc_sc[...] * r).astype(o_ref.dtype)
        if return_weights:
            # Valid because the wrapper forces a single K block when weights are
            # requested (p spans the full K extent and m_new / denom are final).
            # TODO(synk): for tiny K (<128 lanes) this writeback still uses masked
            # partial stores; pass return_attention_weights=False when unneeded.
            w_ref[...] = (p * r.astype(p.dtype)).astype(w_ref.dtype)

    # TODO(synk): training-mode dropout on the attention weights would use
    # pltpu.prng_seed + pltpu.stateful_bernoulli; identity here (eval / p = 0).


# --------------------------------------------------------------------------------------
# Hardware-aware sizing helpers
# --------------------------------------------------------------------------------------
def _is_bf16(dt):
    return dt is not None and jnp.dtype(dt) == jnp.dtype(jnp.bfloat16)


def _bf16_math_supported():
    """bf16 VPU/EUP math exists on v6e and newer; v2-v5 keep the softmax in f32."""
    try:
        kind = jax.devices()[0].device_kind.lower()
    except Exception:
        return False
    return not any(g in kind for g in ("v2", "v3", "v4", "v5"))


def _vmem_params():
    """Per-generation (block budget, vmem_limit_bytes).

    v5e/v6e: 128 MiB physical -> 24 MiB budget / 48 MiB limit.
    v7x:      64 MiB physical -> 24 MiB budget / 40 MiB limit (re-derived, not ported).
    """
    phys = 64 * 1024 * 1024
    try:
        info = pltpu.get_tpu_info()
        phys = int(getattr(info, "vmem_capacity_bytes", phys) or phys)
    except Exception:
        pass
    budget = max(8 << 20, min((phys * 3) // 8, 24 << 20))
    limit = max(budget + (8 << 20), min(phys - (24 << 20), 48 << 20))
    return budget, limit


def _largest_divisor_at_most(n, cap):
    cap = max(1, min(n, cap))
    for d in range(cap, 0, -1):
        if n % d == 0:
            return d
    return 1


def _largest_aligned_divisor_at_most(n, cap, align=8):
    """Largest divisor of n that is <= cap and (multiple of `align` or == n).
    Falls back to n (the full extent is always a legal block)."""
    cap = max(1, min(n, cap))
    for d in range(cap, 0, -1):
        if n % d == 0 and (d % align == 0 or d == n):
            return d
    return n


def _pick_blocks(B, Q, K, D, V, *, return_weights, apply_mask,
                 mm_bytes, sm_bytes, w_bytes, vmem_budget,
                 block_b=None, block_q=None, block_k=None):
    user_bq = block_q is not None
    user_bb = block_b is not None

    def step_bytes(bb, bq, bk):
        # Double-buffered I/O tiles.
        io = 2 * bb * (bq * D + bk * (D + V)) * mm_bytes + 2 * bb * bq * V * 4
        if return_weights:
            io += 2 * bb * bq * K * w_bytes
        if apply_mask:
            io += 2 * bb * 4
        # Persistent scratch (running max, denom, f32 accumulator).
        scratch = bb * bq * (V + 2) * 4
        # In-flight intermediates: f32 scores, softmax-dtype p, matmul-dtype p copy,
        # f32 copy for the denominator sum, int32 iota/compare when masking, plus the
        # f32 pv / rescale temporaries.
        interm = bb * bq * bk * (4 + sm_bytes + mm_bytes + 4 + (8 if apply_mask else 0))
        interm += bb * bq * (V + 4) * 4
        return io + scratch + interm

    # K tile: full K when emitting weights (the whole row is materialised anyway);
    # otherwise a lane-dense, 8-aligned tile so long sequences don't force tiny
    # batch/Q blocks (flash pattern).
    if block_k is None:
        if return_weights or K <= 2048:
            block_k = K
        else:
            block_k = _largest_aligned_divisor_at_most(K, 512, 8)

    # Q tile: as large as the budget allows, 8-aligned (or the full Q extent).
    if block_q is None:
        block_q = _largest_aligned_divisor_at_most(Q, 1024, 8)
        while block_q > 8 and step_bytes(1, block_q, block_k) > vmem_budget:
            smaller = _largest_aligned_divisor_at_most(Q, block_q // 2, 8)
            if smaller >= block_q:
                break
            block_q = smaller

    # If a single batch element still doesn't fit, shrink the K tile too (only on the
    # no-weights / flash path).
    if not return_weights and block_k % 8 == 0:
        while block_k > 128 and step_bytes(1, block_q, block_k) > vmem_budget:
            smaller = _largest_aligned_divisor_at_most(K, block_k // 2, 8)
            if smaller >= block_k:
                break
            block_k = smaller

    # Batch blocking: pack as many batch elements as fit the budget.
    if block_b is None:
        block_b = 1
        for cand in range(min(B, 64), 0, -1):
            if B % cand == 0 and step_bytes(cand, block_q, block_k) <= vmem_budget:
                block_b = cand
                break

    # Keep >=2 steps on the parallel (batch x Q) axes so both v7x TensorCores get
    # work (no-op on single-TC v5e/v6e); split B first, then Q.
    if (B // block_b) * (Q // block_q) < 2:
        if B > 1 and not user_bb:
            block_b = _largest_divisor_at_most(B, B // 2)
        elif Q // block_q < 2 and not user_bq:
            smaller = _largest_aligned_divisor_at_most(Q, block_q // 2, 8)
            if smaller < block_q:
                block_q = smaller

    return block_b, block_q, block_k


# --------------------------------------------------------------------------------------
# Wrapper
# --------------------------------------------------------------------------------------
def dot_product_attention(queries, keys, values, valid_lens=None, *,
                          return_attention_weights=True,
                          matmul_dtype=jnp.bfloat16,
                          softmax_dtype=None,
                          weights_dtype=None,
                          block_b=None, block_q=None, block_k=None):
    """Pallas TPU scaled dot-product attention (d2l DotProductAttention, eval mode).

    queries: (B, Q, D), keys: (B, K, D), values: (B, K, V), float32.
    valid_lens: (B,) int or None (None specialization skips all mask compute; rows
        with valid_lens == 0 get a uniform softmax, matching d2l's -1e6 fill).
    matmul_dtype: jnp.bfloat16 (default; bf16-native MXU on v5e/v6e/v7x, f32 accum) or
        None for a strict f32 path.
    softmax_dtype: dtype of the exp/probability tensor; defaults to bf16 on v6e/v7x
        when matmul_dtype is bf16, else f32 (running max/denominator always f32).
    weights_dtype: dtype of the returned attention weights; defaults to bf16 when
        matmul_dtype is bf16 (halves the (B,Q,K) writeback), else f32.
    Returns (context (B, Q, V) f32, attention_weights (B, Q, K) or None).
    """
    B, Q, D = queries.shape
    Bk, K, Dk = keys.shape
    Bv, Kv, V = values.shape
    assert (Bk, Dk) == (B, D) and (Bv, Kv) == (B, K)

    apply_mask = valid_lens is not None

    mm_dtype = None if matmul_dtype is None else jnp.dtype(matmul_dtype)
    if softmax_dtype is None:
        softmax_dtype = (jnp.bfloat16 if (_is_bf16(mm_dtype) and _bf16_math_supported())
                         else jnp.float32)
    softmax_dtype = jnp.dtype(softmax_dtype)
    if weights_dtype is None:
        weights_dtype = jnp.bfloat16 if _is_bf16(mm_dtype) else jnp.float32
    weights_dtype = jnp.dtype(weights_dtype)

    # Cast Q/K/V once in the wrapper: halves K/V HBM->VMEM DMA bytes and removes the
    # per-Q-tile in-kernel casts of the (unchanged) K/V block.
    if mm_dtype is not None and queries.dtype != mm_dtype:
        queries = queries.astype(mm_dtype)
        keys = keys.astype(mm_dtype)
        values = values.astype(mm_dtype)
    in_bytes = queries.dtype.itemsize

    vmem_budget, vmem_limit = _vmem_params()
    bb, bq, bk = _pick_blocks(
        B, Q, K, D, V,
        return_weights=return_attention_weights, apply_mask=apply_mask,
        mm_bytes=in_bytes, sm_bytes=softmax_dtype.itemsize,
        w_bytes=weights_dtype.itemsize, vmem_budget=vmem_budget,
        block_b=block_b, block_q=block_q, block_k=block_k)

    assert B % bb == 0 and Q % bq == 0 and K % bk == 0
    assert bq % 8 == 0 or bq == Q, "block_q must be 8-aligned or the full Q extent"
    assert bk % 8 == 0 or bk == K, "block_k must be 8-aligned or the full K extent"
    if return_attention_weights:
        assert bk == K, "attention-weights output requires a single K block"
    grid = (B // bb, Q // bq, K // bk)

    kernel = functools.partial(
        _attn_kernel,
        scale=1.0 / math.sqrt(D),
        apply_mask=apply_mask,
        return_weights=return_attention_weights,
        softmax_dtype=softmax_dtype)

    in_specs, inputs = [], []
    if apply_mask:
        in_specs.append(pl.BlockSpec((bb, 1, 1), lambda bi, qi, ki: (bi, 0, 0)))
        inputs.append(jnp.asarray(valid_lens, jnp.int32).reshape(B, 1, 1))
    in_specs += [
        pl.BlockSpec((bb, bq, D), lambda bi, qi, ki: (bi, qi, 0)),
        pl.BlockSpec((bb, bk, D), lambda bi, qi, ki: (bi, ki, 0)),
        pl.BlockSpec((bb, bk, V), lambda bi, qi, ki: (bi, ki, 0)),
    ]
    inputs += [queries, keys, values]

    out_specs = [pl.BlockSpec((bb, bq, V), lambda bi, qi, ki: (bi, qi, 0))]
    out_shape = [jax.ShapeDtypeStruct((B, Q, V), jnp.float32)]
    if return_attention_weights:
        out_specs.append(pl.BlockSpec((bb, bq, K), lambda bi, qi, ki: (bi, qi, 0)))
        out_shape.append(jax.ShapeDtypeStruct((B, Q, K), weights_dtype))

    scratch_shapes = [
        pltpu.VMEM((bb, bq, 1), jnp.float32),   # running max
        pltpu.VMEM((bb, bq, 1), jnp.float32),   # running denominator
        pltpu.VMEM((bb, bq, V), jnp.float32),   # f32 output accumulator
    ]

    kv_reads = (Q // bq) if (K // bk) > 1 else 1   # K/V re-read only when K is tiled
    flops = 2 * B * Q * K * (D + V)
    bytes_accessed = (B * Q * D * in_bytes
                      + kv_reads * B * K * (D + V) * in_bytes
                      + B * Q * V * 4
                      + (B * Q * K * weights_dtype.itemsize
                         if return_attention_weights else 0))
    cost = pl.CostEstimate(flops=flops, transcendentals=B * Q * K,
                           bytes_accessed=bytes_accessed)

    outs = pl.pallas_call(
        kernel,
        grid_spec=pltpu.PrefetchScalarGridSpec(
            num_scalar_prefetch=0,
            grid=grid,
            in_specs=in_specs,
            out_specs=out_specs,
            scratch_shapes=scratch_shapes),
        out_shape=tuple(out_shape),
        compiler_params=pltpu.CompilerParams(
            dimension_semantics=("parallel", "parallel", "arbitrary"),
            vmem_limit_bytes=vmem_limit),
        cost_estimate=cost,
    )(*inputs)

    if return_attention_weights:
        return outs[0], outs[1]
    return outs[0], None


def encoder_decoder_forward(enc_X, dec_X, enc_valid_lens=None, **attn_kwargs):
    """EncoderDecoder.forward analogue built on the Pallas attention kernel:
         enc_outputs = encoder(enc_X)            (self-attention over the source)
         dec_state   = init_state(enc_outputs)   (= (enc_outputs, enc_valid_lens))
         return decoder(dec_X, dec_state)        (cross-attention over enc_outputs)
    """
    enc_outputs, _ = dot_product_attention(enc_X, enc_X, enc_X, enc_valid_lens,
                                           return_attention_weights=False,
                                           **attn_kwargs)
    dec_state = (enc_outputs, enc_valid_lens)
    mem, mem_lens = dec_state
    dec_outputs, dec_attn = dot_product_attention(dec_X, mem, mem, mem_lens,
                                                  return_attention_weights=True,
                                                  **attn_kwargs)
    return dec_outputs, dec_attn


# --------------------------------------------------------------------------------------
# Pure-JAX references
# --------------------------------------------------------------------------------------
def _attention_reference(queries, keys, values, valid_lens):
    d = queries.shape[-1]
    scores = jnp.einsum("bqd,bkd->bqk", queries, keys) / math.sqrt(d)
    if valid_lens is not None:
        col = jnp.arange(scores.shape[-1])[None, None, :]
        scores = jnp.where(col < valid_lens[:, None, None], scores, -1000000.0)
    w = jax.nn.softmax(scores, axis=-1)
    return jnp.einsum("bqk,bkv->bqv", w, values), w


def _encdec_reference(enc_X, dec_X, enc_valid_lens):
    enc_outputs, _ = _attention_reference(enc_X, enc_X, enc_X, enc_valid_lens)
    return _attention_reference(dec_X, enc_outputs, enc_outputs, enc_valid_lens)


if __name__ == "__main__":
    # Small shapes consistent with the module: batch=2, source seq=8, target seq=8, hidden=32.
    B, S_enc, S_dec, D = 2, 8, 8, 32
    k1, k2 = jax.random.split(jax.random.PRNGKey(0))
    enc_X = jax.random.normal(k1, (B, S_enc, D), dtype=jnp.float32)
    dec_X = jax.random.normal(k2, (B, S_dec, D), dtype=jnp.float32)
    enc_valid_lens = jnp.array([3, 6], dtype=jnp.int32)

    ref_out, ref_w = _encdec_reference(enc_X, dec_X, enc_valid_lens)

    # 1) Strict-precision composed forward (f32 MXU / f32 softmax / f32 weights).
    out32, w32 = encoder_decoder_forward(enc_X, dec_X, enc_valid_lens, matmul_dtype=None)
    jax.block_until_ready((out32, w32))
    assert jnp.allclose(out32, ref_out, atol=1e-4, rtol=1e-4)
    assert jnp.allclose(w32, ref_w, atol=1e-4, rtol=1e-4)

    # 2) Default fast path (bf16 MXU inputs; bf16 softmax/weights where supported).
    #    Two stacked bf16 attention stages vs. an f32 reference -> loose sanity
    #    tolerance; strict correctness is covered by (1).
    out_bf, w_bf = encoder_decoder_forward(enc_X, dec_X, enc_valid_lens)
    jax.block_until_ready((out_bf, w_bf))
    assert jnp.allclose(out_bf, ref_out, atol=1.5e-1, rtol=1e-1)
    assert jnp.allclose(w_bf.astype(jnp.float32), ref_w, atol=1e-1, rtol=1e-1)

    # 3) Unmasked and context-only specializations (strict f32).
    out_nm, w_nm = dot_product_attention(dec_X, enc_X, enc_X, None, matmul_dtype=None)
    ref_nm, ref_wnm = _attention_reference(dec_X, enc_X, enc_X, None)
    assert jnp.allclose(out_nm, ref_nm, atol=1e-4, rtol=1e-4)
    assert jnp.allclose(w_nm, ref_wnm, atol=1e-4, rtol=1e-4)

    out_ctx, none_w = dot_product_attention(enc_X, enc_X, enc_X, enc_valid_lens,
                                            return_attention_weights=False,
                                            matmul_dtype=None)
    enc_ref, _ = _attention_reference(enc_X, enc_X, enc_X, enc_valid_lens)
    assert none_w is None
    assert jnp.allclose(out_ctx, enc_ref, atol=1e-4, rtol=1e-4)

    # 4) Larger shapes: batch-blocking + Q-tiling, masked, weights returned, default
    #    bf16 fast path (single K block since weights are materialised).
    B2, Q2, K2, D2, V2 = 4, 128, 128, 32, 64
    kq, kk, kv = jax.random.split(jax.random.PRNGKey(1), 3)
    q2 = jax.random.normal(kq, (B2, Q2, D2), dtype=jnp.float32)
    k2_ = jax.random.normal(kk, (B2, K2, D2), dtype=jnp.float32)
    v2 = jax.random.normal(kv, (B2, K2, V2), dtype=jnp.float32)
    vl2 = jnp.array([17, 64, 100, 128], dtype=jnp.int32)
    ref2, refw2 = _attention_reference(q2, k2_, v2, vl2)
    out2, w2 = dot_product_attention(q2, k2_, v2, vl2)
    jax.block_until_ready((out2, w2))
    assert jnp.allclose(out2, ref2, atol=7.5e-2, rtol=7.5e-2)
    assert jnp.allclose(w2.astype(jnp.float32), refw2, atol=7.5e-2, rtol=7.5e-2)

    # 5) Flash K-tiled path (context only, K split across the innermost "arbitrary"
    #    axis with online softmax), masked (including a valid_len==0 row), strict f32
    #    and default bf16.
    B3, Q3, K3, D3, V3 = 2, 128, 256, 32, 64
    kq3, kk3, kv3 = jax.random.split(jax.random.PRNGKey(2), 3)
    q3 = jax.random.normal(kq3, (B3, Q3, D3), dtype=jnp.float32)
    k3 = jax.random.normal(kk3, (B3, K3, D3), dtype=jnp.float32)
    v3 = jax.random.normal(kv3, (B3, K3, V3), dtype=jnp.float32)
    vl3 = jnp.array([0, 200], dtype=jnp.int32)
    ref3, _ = _attention_reference(q3, k3, v3, vl3)
    out3, _ = dot_product_attention(q3, k3, v3, vl3, return_attention_weights=False,
                                    matmul_dtype=None, block_k=128)
    jax.block_until_ready(out3)
    assert jnp.allclose(out3, ref3, atol=1e-4, rtol=1e-4)
    out3b, _ = dot_product_attention(q3, k3, v3, vl3, return_attention_weights=False,
                                     block_k=128)
    jax.block_until_ready(out3b)
    assert jnp.allclose(out3b, ref3, atol=7.5e-2, rtol=7.5e-2)

    print("KERNEL_OK")
</pallas_src>

<mosaic_0001>
module attributes {stable_mosaic.version = 11 : i64} {
  func.func @_attn_kernel(%arg0: i32, %arg1: i32, %arg2: i32, %arg3: memref<1x1x1xi32, #tpu.memory_space<vmem>>, %arg4: memref<1x8x32xf32, #tpu.memory_space<vmem>>, %arg5: memref<1x8x32xf32, #tpu.memory_space<vmem>>, %arg6: memref<1x8x32xf32, #tpu.memory_space<vmem>>, %arg7: memref<1x8x32xf32, #tpu.memory_space<vmem>>, %arg8: memref<1x8x1xf32, #tpu.memory_space<vmem>>, %arg9: memref<1x8x1xf32, #tpu.memory_space<vmem>>, %arg10: memref<1x8x32xf32, #tpu.memory_space<vmem>>) attributes {dimension_semantics = [#tpu.dimension_semantics<parallel>, #tpu.dimension_semantics<parallel>, #tpu.dimension_semantics<arbitrary>], iteration_bounds = array<i64: 2, 1, 1>, scalar_prefetch = 0 : i64, scratch_operands = 3 : i64, tpu.core_type = #tpu.core_type<tc>, window_params = [{transform_indices = @transform_0, window_bounds = array<i64: 1, 1, 1>}, {transform_indices = @transform_1, window_bounds = array<i64: 1, 8, 32>}, {transform_indices = @transform_2, window_bounds = array<i64: 1, 8, 32>}, {transform_indices = @transform_3, window_bounds = array<i64: 1, 8, 32>}, {transform_indices = @transform_4, window_bounds = array<i64: 1, 8, 32>}]} {
    %c0_i32 = arith.constant 0 : i32
    %0 = arith.cmpi eq, %arg2, %c0_i32 : i32
    %1 = arith.extui %0 : i1 to i32
    %c0_i32_0 = arith.constant 0 : i32
    %2 = arith.cmpi ne, %1, %c0_i32_0 : i32
    scf.if %2 {
      %cst_37 = arith.constant 0xFF800000 : f32
      %43 = vector.broadcast %cst_37 : f32 to vector<1x8x1xf32>
      %c0_38 = arith.constant 0 : index
      %c0_39 = arith.constant 0 : index
      %c0_40 = arith.constant 0 : index
      %44 = vector.load %arg8[%c0_38, %c0_39, %c0_40] : memref<1x8x1xf32, #tpu.memory_space<vmem>>, vector<1x8x1xf32>
      tpu.vector_store %arg8[%c0_38, %c0_39, %c0_40], %43 {strides = array<i32>} : memref<1x8x1xf32, #tpu.memory_space<vmem>>, vector<1x8x1xf32>,
      %cst_41 = arith.constant 0.000000e+00 : f32
      %45 = vector.broadcast %cst_41 : f32 to vector<1x8x1xf32>
      %c0_42 = arith.constant 0 : index
      %c0_43 = arith.constant 0 : index
      %c0_44 = arith.constant 0 : index
      %46 = vector.load %arg9[%c0_42, %c0_43, %c0_44] : memref<1x8x1xf32, #tpu.memory_space<vmem>>, vector<1x8x1xf32>
      tpu.vector_store %arg9[%c0_42, %c0_43, %c0_44], %45 {strides = array<i32>} : memref<1x8x1xf32, #tpu.memory_space<vmem>>, vector<1x8x1xf32>,
      %cst_45 = arith.constant 0.000000e+00 : f32
      %47 = vector.broadcast %cst_45 : f32 to vector<1x8x32xf32>
      %c0_46 = arith.constant 0 : index
      %c0_47 = arith.constant 0 : index
      %c0_48 = arith.constant 0 : index
      %48 = vector.load %arg10[%c0_46, %c0_47, %c0_48] : memref<1x8x32xf32, #tpu.memory_space<vmem>>, vector<1x8x32xf32>
      tpu.vector_store %arg10[%c0_46, %c0_47, %c0_48], %47 {strides = array<i32>} : memref<1x8x32xf32, #tpu.memory_space<vmem>>, vector<1x8x32xf32>,
    } else {
    }
    %c0 = arith.constant 0 : index
    %c0_1 = arith.constant 0 : index
    %c0_2 = arith.constant 0 : index
    %3 = vector.load %arg4[%c0, %c0_1, %c0_2] : memref<1x8x32xf32, #tpu.memory_space<vmem>>, vector<1x8x32xf32>
    %c0_3 = arith.constant 0 : index
    %c0_4 = arith.constant 0 : index
    %c0_5 = arith.constant 0 : index
    %4 = vector.load %arg5[%c0_3, %c0_4, %c0_5] : memref<1x8x32xf32, #tpu.memory_space<vmem>>, vector<1x8x32xf32>
    %c0_6 = arith.constant 0 : index
    %c0_7 = arith.constant 0 : index
    %c0_8 = arith.constant 0 : index
    %5 = vector.load %arg6[%c0_6, %c0_7, %c0_8] : memref<1x8x32xf32, #tpu.memory_space<vmem>>, vector<1x8x32xf32>
    %cst = arith.constant 0.176776692 : f32
    %6 = vector.broadcast %cst : f32 to vector<1x8x32xf32>
    %7 = arith.mulf %3, %6 : vector<1x8x32xf32>
    %cst_9 = arith.constant dense<0.000000e+00> : vector<1x8x8xf32>
    %8 = tpu.matmul %7, %4, %cst_9 {dimension_numbers = #tpu.dot_dimension_numbers<[2], [2], [1], [1], [0, 0, 0, 1, 1, 1], [0], [0]>} : vector<1x8x32xf32>, vector<1x8x32xf32>, vector<1x8x8xf32> -> vector<1x8x8xf32>
    %c0_10 = arith.constant 0 : index
    %c0_11 = arith.constant 0 : index
    %c0_12 = arith.constant 0 : index
    %9 = vector.load %arg3[%c0_10, %c0_11, %c0_12] : memref<1x1x1xi32, #tpu.memory_space<vmem>>, vector<1x1x1xi32>
    %10 = tpu.iota {dimensions = array<i32: 2>} : vector<1x8x8xi32>
    %c8_i32 = arith.constant 8 : i32
    %11 = arith.muli %arg2, %c8_i32 : i32
    %12 = vector.broadcast %11 : i32 to vector<1x8x8xi32>
    %13 = arith.addi %10, %12 : vector<1x8x8xi32>
    %14 = vector.broadcast %9 : vector<1x1x1xi32> to vector<1x8x8xi32>
    %15 = arith.cmpi slt, %13, %14 : vector<1x8x8xi32>
    %cst_13 = arith.constant -1.000000e+06 : f32
    %16 = vector.broadcast %cst_13 : f32 to vector<1x8x8xf32>
    %17 = arith.select %15, %8, %16 : vector<1x8x8xi1>, vector<1x8x8xf32>
    %c0_14 = arith.constant 0 : index
    %c0_15 = arith.constant 0 : index
    %c0_16 = arith.constant 0 : index
    %18 = vector.load %arg8[%c0_14, %c0_15, %c0_16] : memref<1x8x1xf32, #tpu.memory_space<vmem>>, vector<1x8x1xf32>
    %cst_17 = arith.constant dense<0xFF800000> : vector<1x8xf32>
    %19 = vector.multi_reduction <maximumf>, %17, %cst_17 [2] : vector<1x8x8xf32> to vector<1x8xf32>
    %20 = vector.shape_cast %19 : vector<1x8xf32> to vector<1x8x1xf32>
    %21 = arith.maximumf %18, %20 : vector<1x8x1xf32>
    %22 = arith.subf %18, %21 : vector<1x8x1xf32>
    %23 = math.exp %22 : vector<1x8x1xf32>
    %24 = vector.broadcast %21 : vector<1x8x1xf32> to vector<1x8x8xf32>
    %25 = arith.subf %17, %24 : vector<1x8x8xf32>
    %26 = math.exp %25 : vector<1x8x8xf32>
    %c0_18 = arith.constant 0 : index
    %c0_19 = arith.constant 0 : index
    %c0_20 = arith.constant 0 : index
    %27 = vector.load %arg9[%c0_18, %c0_19, %c0_20] : memref<1x8x1xf32, #tpu.memory_space<vmem>>, vector<1x8x1xf32>
    %28 = arith.mulf %23, %27 : vector<1x8x1xf32>
    %cst_21 = arith.constant dense<0.000000e+00> : vector<1x8xf32>
    %29 = vector.multi_reduction <add>, %26, %cst_21 [2] : vector<1x8x8xf32> to vector<1x8xf32>
    %30 = vector.shape_cast %29 : vector<1x8xf32> to vector<1x8x1xf32>
    %31 = arith.addf %28, %30 : vector<1x8x1xf32>
    %c0_22 = arith.constant 0 : index
    %c0_23 = arith.constant 0 : index
    %c0_24 = arith.constant 0 : index
    %32 = vector.load %arg9[%c0_22, %c0_23, %c0_24] : memref<1x8x1xf32, #tpu.memory_space<vmem>>, vector<1x8x1xf32>
    tpu.vector_store %arg9[%c0_22, %c0_23, %c0_24], %31 {strides = array<i32>} : memref<1x8x1xf32, #tpu.memory_space<vmem>>, vector<1x8x1xf32>,
    %cst_25 = arith.constant dense<0.000000e+00> : vector<1x8x32xf32>
    %33 = tpu.matmul %26, %5, %cst_25 {dimension_numbers = #tpu.dot_dimension_numbers<[2], [1], [1], [2], [0, 0, 0, 1, 1, 2], [0], [0]>} : vector<1x8x8xf32>, vector<1x8x32xf32>, vector<1x8x32xf32> -> vector<1x8x32xf32>
    %c0_26 = arith.constant 0 : index
    %c0_27 = arith.constant 0 : index
    %c0_28 = arith.constant 0 : index
    %34 = vector.load %arg10[%c0_26, %c0_27, %c0_28] : memref<1x8x32xf32, #tpu.memory_space<vmem>>, vector<1x8x32xf32>
    %35 = vector.broadcast %23 : vector<1x8x1xf32> to vector<1x8x32xf32>
    %36 = arith.mulf %35, %34 : vector<1x8x32xf32>
    %37 = arith.addf %36, %33 : vector<1x8x32xf32>
    %c0_29 = arith.constant 0 : index
    %c0_30 = arith.constant 0 : index
    %c0_31 = arith.constant 0 : index
    %38 = vector.load %arg10[%c0_29, %c0_30, %c0_31] : memref<1x8x32xf32, #tpu.memory_space<vmem>>, vector<1x8x32xf32>
    tpu.vector_store %arg10[%c0_29, %c0_30, %c0_31], %37 {strides = array<i32>} : memref<1x8x32xf32, #tpu.memory_space<vmem>>, vector<1x8x32xf32>,
    %c0_32 = arith.constant 0 : index
    %c0_33 = arith.constant 0 : index
    %c0_34 = arith.constant 0 : index
    %39 = vector.load %arg8[%c0_32, %c0_33, %c0_34] : memref<1x8x1xf32, #tpu.memory_space<vmem>>, vector<1x8x1xf32>
    tpu.vector_store %arg8[%c0_32, %c0_33, %c0_34], %21 {strides = array<i32>} : memref<1x8x1xf32, #tpu.memory_space<vmem>>, vector<1x8x1xf32>,
    %c0_i32_35 = arith.constant 0 : i32
    %40 = arith.cmpi eq, %arg2, %c0_i32_35 : i32
    %41 = arith.extui %40 : i1 to i32
    %c0_i32_36 = arith.constant 0 : i32
    %42 = arith.cmpi ne, %41, %c0_i32_36 : i32
    scf.if %42 {
      %c0_37 = arith.constant 0 : index
      %c0_38 = arith.constant 0 : index
      %c0_39 = arith.constant 0 : index
      %43 = vector.load %arg9[%c0_37, %c0_38, %c0_39] : memref<1x8x1xf32, #tpu.memory_space<vmem>>, vector<1x8x1xf32>
      %44 = tpu.reciprocal %43 {approx = true} : vector<1x8x1xf32> -> vector<1x8x1xf32>
      %45 = arith.mulf %43, %44 : vector<1x8x1xf32>
      %cst_40 = arith.constant 2.000000e+00 : f32
      %46 = vector.broadcast %cst_40 : f32 to vector<1x8x1xf32>
      %47 = arith.subf %46, %45 : vector<1x8x1xf32>
      %48 = arith.mulf %44, %47 : vector<1x8x1xf32>
      %c0_41 = arith.constant 0 : index
      %c0_42 = arith.constant 0 : index
      %c0_43 = arith.constant 0 : index
      %49 = vector.load %arg10[%c0_41, %c0_42, %c0_43] : memref<1x8x32xf32, #tpu.memory_space<vmem>>, vector<1x8x32xf32>
      %50 = vector.broadcast %48 : vector<1x8x1xf32> to vector<1x8x32xf32>
      %51 = arith.mulf %49, %50 : vector<1x8x32xf32>
      %c0_44 = arith.constant 0 : index
      %c0_45 = arith.constant 0 : index
      %c0_46 = arith.constant 0 : index
      %52 = vector.load %arg7[%c0_44, %c0_45, %c0_46] : memref<1x8x32xf32, #tpu.memory_space<vmem>>, vector<1x8x32xf32>
      tpu.vector_store %arg7[%c0_44, %c0_45, %c0_46], %51 {strides = array<i32>} : memref<1x8x32xf32, #tpu.memory_space<vmem>>, vector<1x8x32xf32>,
    } else {
    }
    return
  }
  func.func @transform_0(%arg0: i32, %arg1: i32, %arg2: i32) -> (i32, i32, i32) {
    %c0_i32 = arith.constant 0 : i32
    %c0_i32_0 = arith.constant 0 : i32
    %c0_i32_1 = arith.constant 0 : i32
    return %arg0, %c0_i32, %c0_i32_0 : i32, i32, i32
  }
  func.func @transform_1(%arg0: i32, %arg1: i32, %arg2: i32) -> (i32, i32, i32) {
    %c0_i32 = arith.constant 0 : i32
    %c0_i32_0 = arith.constant 0 : i32
    return %arg0, %arg1, %c0_i32 : i32, i32, i32
  }
  func.func @transform_2(%arg0: i32, %arg1: i32, %arg2: i32) -> (i32, i32, i32) {
    %c0_i32 = arith.constant 0 : i32
    %c0_i32_0 = arith.constant 0 : i32
    return %arg0, %arg2, %c0_i32 : i32, i32, i32
  }
  func.func @transform_3(%arg0: i32, %arg1: i32, %arg2: i32) -> (i32, i32, i32) {
    %c0_i32 = arith.constant 0 : i32
    %c0_i32_0 = arith.constant 0 : i32
    return %arg0, %arg2, %c0_i32 : i32, i32, i32
  }
  func.func @transform_4(%arg0: i32, %arg1: i32, %arg2: i32) -> (i32, i32, i32) {
    %c0_i32 = arith.constant 0 : i32
    %c0_i32_0 = arith.constant 0 : i32
    return %arg0, %arg1, %c0_i32 : i32, i32, i32
  }
}

</mosaic_0001>

<llo_original>
// kernel: tpu_custom_call.1
$region0: #{tpu_custom_call.1}
  #allocation0 [shape = 'u32[]', space=smem, size = 0x4, offset = 0x4, fixed_abs, tag = 'smem constant byte address 0x4 - core index']
  #allocation1 [shape = 'u32[144,128]{1,0:T(1,128)}', space=vmem, size = 0x12000, scoped, tag = 'internal scratch']
  #allocation2 [shape = 'f32[1,8,1]{2,1,0:T(8,128)}', space=vmem, size = 0x1000, scoped, tag = 'scratch operand']
  #allocation3 [shape = 'f32[1,8,1]{2,1,0:T(8,128)}', space=vmem, size = 0x1000, scoped, tag = 'scratch operand']
  #allocation4 [shape = 'f32[1,8,32]{2,1,0:T(8,128)}', space=vmem, size = 0x1000, scoped, tag = 'scratch operand']
  %s0 = inlined_call_operand.vmem [shape: s32[2,1,1], index: 0, kind: input, shape index: {}]
  %s1 = inlined_call_operand.hbm [shape: f32[2,8,32], index: 1, kind: input, shape index: {}]
  %s2 = inlined_call_operand.hbm [shape: f32[2,8,32], index: 2, kind: input, shape index: {}]
  %s3 = inlined_call_operand.hbm [shape: f32[2,8,32], index: 3, kind: input, shape index: {}]
  %s4 = inlined_call_operand.hbm [shape: f32[2,8,32], index: 4, kind: output, shape index: {}]
  %s5 = sld [smem:[#allocation0]]
  $region69: #{tpu_custom_call.1} parent=0
    _
  %s7 = ssub.s32 1, %s5
  %s8 = scalar_select 0, %s7, %s5
  $region1: #{tpu_custom_call.1} parent=0
    #allocation5 [shape = 'u8[8192]{0}', space=vmem, size = 0x2000, scoped, tag = 'input window, operand 1']
    #allocation6 [shape = 's32[2]{0}', space=sflag, size = 0x8, scoped, tag = 'scoped memory for tpu_custom_call.1']
    #allocation7 [shape = 's32[2]{0}', space=sflag, size = 0x8, scoped, tag = 'scoped memory for tpu_custom_call.1']
    #allocation8 [shape = 'u8[8192]{0}', space=vmem, size = 0x2000, scoped, tag = 'input window, operand 2']
    #allocation9 [shape = 's32[2]{0}', space=sflag, size = 0x8, scoped, tag = 'scoped memory for tpu_custom_call.1']
    #allocation10 [shape = 'u8[8192]{0}', space=vmem, size = 0x2000, scoped, tag = 'input window, operand 3']
    #allocation11 [shape = 'u8[8192]{0}', space=vmem, size = 0x2000, scoped, tag = 'output window, operand 0']
    %9 = vsyncpa [#allocation6], 0
    %s10 = scalar_lea.sflag [#allocation6], 1
    %11 = vsyncpa %s10, 0
    %12 = vsyncpa [#allocation9], 0
    %s13 = scalar_lea.sflag [#allocation9], 1
    %14 = vsyncpa %s13, 0
    %15 = vsyncpa [#allocation7], 0
    %s16 = scalar_lea.sflag [#allocation7], 1
    %17 = vsyncpa %s16, 0
    loop: start=0, step=1, limit=4
    $region2: #{tpu_custom_call.1} parent=1 // loop_pre_header
      _
    $region3: #{tpu_custom_call.1} parent=1 // loop_header
      %s19 = sphi 0, %s23
      %p20 = scmp.ge.s32.totalorder %s19, 4
      %s26 = sphi 0, %s45
      %s27 = sphi 0, %s41
      %s28 = sphi 0, %s37
      %s29 = sphi 0, %s26
      %s30 = sphi 0, %s27
      %s31 = sphi 0, %s28
      %s32 = sphi 0, %s29
      %s33 = sphi 0, %s30
      %s34 = sphi 0, %s31
      %s48 = sphi 0, %s50
      %s51 = sphi 0, %s48
      %s52 = sphi 0, %s51
      %s68 = sphi 0, %s52
      %s76 = sphi 0, %s78
      %s79 = sphi 0, %s76
      %s80 = sphi 0, %s79
      %s96 = sphi 0, %s80
      %s104 = sphi 0, %s106
      %s107 = sphi 0, %s104
      %s108 = sphi 0, %s107
      %s124 = sphi 0, %s108
      %s132 = sphi 0, %s134
      %s135 = sphi 0, %s132
      %s136 = sphi 0, %s135
      %s152 = sphi 0, %s136
      %s160 = sphi 0, %s162
      %s163 = sphi 0, %s160
      %s164 = sphi 0, %s163
      %s180 = sphi 0, %s164
    $region4: #{tpu_custom_call.1} parent=1 // loop_header_branch
      %22 = sbr.rel (%p20) target = $region8
    $region5: #{tpu_custom_call.1} parent=1 // loop_body
      %s24 = ssub.s32 %s19, 1
      %s25 = ssub.s32 %s19, 2
      %s35 = sadd.s32 1, %s28
      %p36 = scmp.ge.s32.totalorder %s35, 1
      %s37 = scalar_select %p36, 0, %s35
      %s38 = sadd.s32 1, %s27
      %s39 = scalar_select %p36, %s38, %s27
      %p40 = scmp.ge.s32.totalorder %s39, 1
      %s41 = scalar_select %p40, 0, %s39
      %s42 = sadd.s32 1, %s26
      %s43 = scalar_select %p40, %s42, %s26
      %p44 = scmp.ge.s32.totalorder %s43, 2
      %s45 = scalar_select %p44, 0, %s43
      %s46 = ssub.s32 %s26, %s45
      %p47 = scmp.eq.s32.totalorder %s46, 0
      %s49 = sadd.s32 %s48, 1
      %s50 = scalar_select %p47, %s48, %s49
      %p53 = pneg %p47
      %p54 = scmp.eq.s32.totalorder %s19, 1
      %p55 = por %p53, %p54
      %p56 = scmp.ne.s32.totalorder %s48, %s51
      %p57 = scmp.eq.s32.totalorder %s19, 0
      %p58 = por %p56, %p57
      %p59 = scmp.ne.s32.totalorder %s48, %s51
      %p60 = scmp.eq.s32.totalorder %s24, 1
      %p61 = por %p59, %p60
      %p62 = scmp.ne.s32.totalorder %s51, %s52
      %p63 = scmp.eq.s32.totalorder %s24, 0
      %p64 = por %p62, %p63
      %p65 = scmp.ne.s32.totalorder %s51, %s52
      %p66 = scmp.eq.s32.totalorder %s25, 1
      %p67 = por %p65, %p66
      %p69 = scmp.ne.s32.totalorder %s52, %s68
      %p70 = scmp.eq.s32.totalorder %s25, 0
      %p71 = por %p69, %p70
      %s72 = ssub.s32 %s26, %s45
      %s73 = ssub.s32 %s27, %s41
      %s74 = sor.u32 %s72, %s73
      %p75 = scmp.eq.s32.totalorder %s74, 0
      %s77 = sadd.s32 %s76, 1
      %s78 = scalar_select %p75, %s76, %s77
      %p81 = pneg %p75
      %p82 = scmp.eq.s32.totalorder %s19, 1
      %p83 = por %p81, %p82
      %p84 = scmp.ne.s32.totalorder %s76, %s79
      %p85 = scmp.eq.s32.totalorder %s19, 0
      %p86 = por %p84, %p85
      %p87 = scmp.ne.s32.totalorder %s76, %s79
      %p88 = scmp.eq.s32.totalorder %s24, 1
      %p89 = por %p87, %p88
      %p90 = scmp.ne.s32.totalorder %s79, %s80
      %p91 = scmp.eq.s32.totalorder %s24, 0
      %p92 = por %p90, %p91
      %p93 = scmp.ne.s32.totalorder %s79, %s80
      %p94 = scmp.eq.s32.totalorder %s25, 1
      %p95 = por %p93, %p94
      %p97 = scmp.ne.s32.totalorder %s80, %s96
      %p98 = scmp.eq.s32.totalorder %s25, 0
      %p99 = por %p97, %p98
      %s100 = ssub.s32 %s26, %s45
      %s101 = ssub.s32 %s28, %s37
      %s102 = sor.u32 %s100, %s101
      %p103 = scmp.eq.s32.totalorder %s102, 0
      %s105 = sadd.s32 %s104, 1
      %s106 = scalar_select %p103, %s104, %s105
      %p109 = pneg %p103
      %p110 = scmp.eq.s32.totalorder %s19, 1
      %p111 = por %p109, %p110
      %p112 = scmp.ne.s32.totalorder %s104, %s107
      %p113 = scmp.eq.s32.totalorder %s19, 0
      %p114 = por %p112, %p113
      %p115 = scmp.ne.s32.totalorder %s104, %s107
      %p116 = scmp.eq.s32.totalorder %s24, 1
      %p117 = por %p115, %p116
      %p118 = scmp.ne.s32.totalorder %s107, %s108
      %p119 = scmp.eq.s32.totalorder %s24, 0
      %p120 = por %p118, %p119
      %p121 = scmp.ne.s32.totalorder %s107, %s108
      %p122 = scmp.eq.s32.totalorder %s25, 1
      %p123 = por %p121, %p122
      %p125 = scmp.ne.s32.totalorder %s108, %s124
      %p126 = scmp.eq.s32.totalorder %s25, 0
      %p127 = por %p125, %p126
      %s128 = ssub.s32 %s26, %s45
      %s129 = ssub.s32 %s28, %s37
      %s130 = sor.u32 %s128, %s129
      %p131 = scmp.eq.s32.totalorder %s130, 0
      %s133 = sadd.s32 %s132, 1
      %s134 = scalar_select %p131, %s132, %s133
      %p137 = pneg %p131
      %p138 = scmp.eq.s32.totalorder %s19, 1
      %p139 = por %p137, %p138
      %p140 = scmp.ne.s32.totalorder %s132, %s135
      %p141 = scmp.eq.s32.totalorder %s19, 0
      %p142 = por %p140, %p141
      %p143 = scmp.ne.s32.totalorder %s132, %s135
      %p144 = scmp.eq.s32.totalorder %s24, 1
      %p145 = por %p143, %p144
      %p146 = scmp.ne.s32.totalorder %s135, %s136
      %p147 = scmp.eq.s32.totalorder %s24, 0
      %p148 = por %p146, %p147
      %p149 = scmp.ne.s32.totalorder %s135, %s136
      %p150 = scmp.eq.s32.totalorder %s25, 1
      %p151 = por %p149, %p150
      %p153 = scmp.ne.s32.totalorder %s136, %s152
      %p154 = scmp.eq.s32.totalorder %s25, 0
      %p155 = por %p153, %p154
      %s156 = ssub.s32 %s26, %s45
      %s157 = ssub.s32 %s27, %s41
      %s158 = sor.u32 %s156, %s157
      %p159 = scmp.eq.s32.totalorder %s158, 0
      %s161 = sadd.s32 %s160, 1
      %s162 = scalar_select %p159, %s160, %s161
      %p165 = pneg %p159
      %p166 = scmp.eq.s32.totalorder %s19, 1
      %p167 = por %p165, %p166
      %p168 = scmp.ne.s32.totalorder %s160, %s163
      %p169 = scmp.eq.s32.totalorder %s19, 0
      %p170 = por %p168, %p169
      %p171 = scmp.ne.s32.totalorder %s160, %s163
      %p172 = scmp.eq.s32.totalorder %s24, 1
      %p173 = por %p171, %p172
      %p174 = scmp.ne.s32.totalorder %s163, %s164
      %p175 = scmp.eq.s32.totalorder %s24, 0
      %p176 = por %p174, %p175
      %p177 = scmp.ne.s32.totalorder %s163, %s164
      %p178 = scmp.eq.s32.totalorder %s25, 1
      %p179 = por %p177, %p178
      %p181 = scmp.ne.s32.totalorder %s164, %s180
      %p182 = scmp.eq.s32.totalorder %s25, 0
      %p183 = por %p181, %p182
      %p184 = scmp.le.s32.totalorder 1, %s19
      %p185 = scmp.lt.s32.totalorder %s19, 3
      %p186 = pnand %p184, %p185
      %p187 = pneg %p186
      // Predicated region
      $region9: #{tpu_custom_call.1} parent=5 // pred_check
        _
      $region10: #{tpu_custom_call.1} parent=5 // pred_check_branch
        %189 = sbr.rel (%p186) target = $region12
      $region11: #{tpu_custom_call.1} parent=5 // pred_region
        %s190 = ssub.s32 %s19, 1
      $region12: #{tpu_custom_call.1} parent=5 // pred_fallthru
        _
      %p191 = scmp.lt.s32.totalorder %s19, 2
      // Predicated region
      $region13: #{tpu_custom_call.1} parent=5 // pred_check
        %p192 = pneg %p191
      $region14: #{tpu_custom_call.1} parent=5 // pred_check_branch
        %194 = sbr.rel (%p192) target = $region16
      $region15: #{tpu_custom_call.1} parent=5 // pred_region
        // Predicated region
        $region17: #{tpu_custom_call.1} parent=15 // pred_check
          %p195 = pneg %p58
        $region18: #{tpu_custom_call.1} parent=15 // pred_check_branch
          %197 = sbr.rel (%p195) target = $region20
        $region19: #{tpu_custom_call.1} parent=15 // pred_region
          %p198 = scmp.lt.s32.totalorder %s26, 1
          %s199 = scalar_select %p198, %s26, 1
          %s200 = scalar_lea.vmem %s0, %s199
        $region20: #{tpu_custom_call.1} parent=15 // pred_fallthru
          _
        // Predicated region
        $region21: #{tpu_custom_call.1} parent=15 // pred_check
          %p201 = pneg %p86
        $region22: #{tpu_custom_call.1} parent=15 // pred_check_branch
          %203 = sbr.rel (%p201) target = $region24
        $region23: #{tpu_custom_call.1} parent=15 // pred_region
          %s204 = sand.u32 %s76, 1
          %s205 = scalar_lea.sflag [#allocation6], %s204
          %s206 = sand.u32 %s76, 1
          %s207 = smul.addr %s206, 8
          %s208 = scalar_lea.vmem [#allocation5], %s207
          %s210 = ssub.s32 128, 128
          %211 = vsyncadd %s205, %s210
          %s212 = sadd.s32 %s27, %s26
          %s213 = smul.addr %s212, 128
          %s214 = scalar_lea.hbm %s1, %s213
          %s216 = sshll.u32 %s208, 4
          %s217 = int_to_ptr.vmem [resolvable:$true] %s216
          %219 = dma.hbm_to_vmem [thread:$0]  %s214, 128, %s217, %s205
        $region24: #{tpu_custom_call.1} parent=15 // pred_fallthru
          _
        // Predicated region
        $region25: #{tpu_custom_call.1} parent=15 // pred_check
          %p220 = pneg %p114
        $region26: #{tpu_custom_call.1} parent=15 // pred_check_branch
          %222 = sbr.rel (%p220) target = $region28
        $region27: #{tpu_custom_call.1} parent=15 // pred_region
          %s223 = sand.u32 %s19, 1
          %s224 = scalar_lea.sflag [#allocation9], %s223
          %s225 = sand.u32 %s104, 1
          %s226 = smul.addr %s225, 8
          %s227 = scalar_lea.vmem [#allocation8], %s226
          %s229 = ssub.s32 128, 128
          %230 = vsyncadd %s224, %s229
          %s231 = sadd.s32 %s28, %s26
          %s232 = smul.addr %s231, 128
          %s233 = scalar_lea.hbm %s2, %s232
          %s235 = sshll.u32 %s227, 4
          %s236 = int_to_ptr.vmem [resolvable:$true] %s235
          %238 = dma.hbm_to_vmem [thread:$0]  %s233, 128, %s236, %s224
        $region28: #{tpu_custom_call.1} parent=15 // pred_fallthru
          _
        // Predicated region
        $region29: #{tpu_custom_call.1} parent=15 // pred_check
          %p239 = pneg %p142
        $region30: #{tpu_custom_call.1} parent=15 // pred_check_branch
          %241 = sbr.rel (%p239) target = $region32
        $region31: #{tpu_custom_call.1} parent=15 // pred_region
          %s242 = sand.u32 %s19, 1
          %s243 = scalar_lea.sflag [#allocation9], %s242
          %s244 = sand.u32 %s132, 1
          %s245 = smul.addr %s244, 8
          %s246 = scalar_lea.vmem [#allocation10], %s245
          %s248 = ssub.s32 128, 128
          %249 = vsyncadd %s243, %s248
          %s250 = sadd.s32 %s28, %s26
          %s251 = smul.addr %s250, 128
          %s252 = scalar_lea.hbm %s3, %s251
          %s254 = sshll.u32 %s246, 4
          %s255 = int_to_ptr.vmem [resolvable:$true] %s254
          %257 = dma.hbm_to_vmem [thread:$0]  %s252, 128, %s255, %s243
        $region32: #{tpu_custom_call.1} parent=15 // pred_fallthru
          _
      $region16: #{tpu_custom_call.1} parent=5 // pred_fallthru
        _
      %p258 = scmp.le.s32.totalorder 1, %s19
      %p259 = scmp.lt.s32.totalorder %s19, 3
      %p260 = pnand %p258, %p259
      %p261 = pneg %p260
      // Predicated region
      $region33: #{tpu_custom_call.1} parent=5 // pred_check
        _
      $region34: #{tpu_custom_call.1} parent=5 // pred_check_branch
        %263 = sbr.rel (%p260) target = $region36
      $region35: #{tpu_custom_call.1} parent=5 // pred_region
        %s264 = ssub.s32 %s19, 1
        %s265 = sand.u32 %s79, 1
        %s266 = scalar_lea.sflag [#allocation6], %s265
        %s267 = sand.u32 %s79, 1
        %s268 = smul.addr %s267, 8
        %s269 = scalar_lea.vmem [#allocation5], %s268
        // Predicated region
        $region37: #{tpu_custom_call.1} parent=35 // pred_check
          %p270 = pneg %p92
        $region38: #{tpu_custom_call.1} parent=35 // pred_check_branch
          %272 = sbr.rel (%p270) target = $region40
        $region39: #{tpu_custom_call.1} parent=35 // pred_region
          %273 = dma.done %s266, 128
        $region40: #{tpu_custom_call.1} parent=35 // pred_fallthru
          _
        %s274 = sand.u32 %s24, 1
        %s275 = scalar_lea.sflag [#allocation9], %s274
        %s276 = sand.u32 %s107, 1
        %s277 = smul.addr %s276, 8
        %s278 = scalar_lea.vmem [#allocation8], %s277
        // Predicated region
        $region41: #{tpu_custom_call.1} parent=35 // pred_check
          %p279 = pneg %p120
        $region42: #{tpu_custom_call.1} parent=35 // pred_check_branch
          %281 = sbr.rel (%p279) target = $region44
        $region43: #{tpu_custom_call.1} parent=35 // pred_region
          %282 = dma.done %s275, 128
        $region44: #{tpu_custom_call.1} parent=35 // pred_fallthru
          _
        %s283 = sand.u32 %s24, 1
        %s284 = scalar_lea.sflag [#allocation9], %s283
        %s285 = sand.u32 %s135, 1
        %s286 = smul.addr %s285, 8
        %s287 = scalar_lea.vmem [#allocation10], %s286
        // Predicated region
        $region45: #{tpu_custom_call.1} parent=35 // pred_check
          %p288 = pneg %p148
        $region46: #{tpu_custom_call.1} parent=35 // pred_check_branch
          %290 = sbr.rel (%p288) target = $region48
        $region47: #{tpu_custom_call.1} parent=35 // pred_region
          %291 = dma.done %s284, 128
        $region48: #{tpu_custom_call.1} parent=35 // pred_fallthru
          _
        %p292 = scmp.lt.s32.totalorder %s29, 1
        %s293 = scalar_select %p292, %s29, 1
        %s294 = scalar_lea.vmem %s0, %s293
        %p295 = pneg %p64
        %p296 = pneg %p61
        %s297 = sand.u32 %s79, 1
        %s298 = scalar_lea.sflag [#allocation6], %s297
        %s299 = sand.u32 %s79, 1
        %s300 = smul.addr %s299, 8
        %s301 = scalar_lea.vmem [#allocation5], %s300
        %p302 = pneg %p92
        %p303 = pneg %p89
        %s304 = sand.u32 %s24, 1
        %s305 = scalar_lea.sflag [#allocation9], %s304
        %s306 = sand.u32 %s107, 1
        %s307 = smul.addr %s306, 8
        %s308 = scalar_lea.vmem [#allocation8], %s307
        %p309 = pneg %p120
        %p310 = pneg %p117
        %s311 = sand.u32 %s24, 1
        %s312 = scalar_lea.sflag [#allocation9], %s311
        %s313 = sand.u32 %s135, 1
        %s314 = smul.addr %s313, 8
        %s315 = scalar_lea.vmem [#allocation10], %s314
        %p316 = pneg %p148
        %p317 = pneg %p145
        %p318 = pneg %p176
        %p319 = pneg %p173
        %s320 = sand.u32 %s163, 1
        %s321 = scalar_lea.sflag [#allocation7], %s320
        %s322 = sand.u32 %s163, 1
        %s323 = smul.addr %s322, 8
        %s324 = scalar_lea.vmem [#allocation11], %s323
        %p325 = scmp.lt.s32.totalorder %s29, 1
        %s326 = scalar_select %p325, %s29, 1
        %s327 = scalar_lea.vmem %s0, %s326
        %p328 = scmp.eq.s32.totalorder %s31, 0
        // Predicated region
        $region49: #{tpu_custom_call.1} parent=35 // pred_check
          %p329 = pneg %p328
        $region50: #{tpu_custom_call.1} parent=35 // pred_check_branch
          %331 = sbr.rel (%p329) target = $region52
        $region51: #{tpu_custom_call.1} parent=35 // pred_region
          %vm332 = vcmask 7168
          %333 = vst.msk [vmem:[#allocation2] sm:$0xff] %vm332, -inf
          %334 = vst.msk [vmem:[#allocation3] sm:$0xff] %vm332, 0.0
          %vm335 = vcmask 261120
          %336 = vst.msk [vmem:[#allocation4] sm:$0xff] %vm335, 0.0
        $region52: #{tpu_custom_call.1} parent=35 // pred_fallthru
          _
        %v337 = vld [vmem:[%s269] sm:$0xff]
        %v338 = vld [vmem:[%s278] sm:$0xff]
        %v339 = vld [vmem:[%s287] sm:$0xff]
        %v340 = vmul.f32 %v337, 0.17677669
        %vm341 = vcmask 261120
        %v343 = vsel %vm341, %v340, 0
        %v346 = vsel %vm341, %v338, 0
        %348 = vmatprep.subr.mxu0 0.0
        %349 = vmatpush1.xpose.msra.mxu0 %v346
        %350 = vmatprep.subr.mxu0 0.0
        %351 = vmatpush1.xpose.msra.mxu0 0.0
        %352 = vmatprep.subr.mxu0 0.0
        %353 = vmatpush1.xpose.msra.mxu0 0.0
        %354 = vmatprep.subr.mxu0 0.0
        %355 = vmatpush1.xpose.msra.mxu0 0.0
        %356 = vmatprep.subr.mxu0 0.0
        %357 = vmatpush1.xpose.msra.mxu0 0.0
        %358 = vmatprep.subr.mxu0 0.0
        %359 = vmatpush1.xpose.msra.mxu0 0.0
        %360 = vmatprep.subr.mxu0 0.0
        %361 = vmatpush1.xpose.msra.mxu0 0.0
        %362 = vmatprep.subr.mxu0 0.0
        %363 = vmatpush1.xpose.msra.mxu0 0.0
        %364 = vmatprep.subr.mxu0 0.0
        %365 = vmatpush1.xpose.msra.mxu0 0.0
        %366 = vmatprep.subr.mxu0 0.0
        %367 = vmatpush1.xpose.msra.mxu0 0.0
        %368 = vmatprep.subr.mxu0 0.0
        %369 = vmatpush1.xpose.msra.mxu0 0.0
        %370 = vmatprep.subr.mxu0 0.0
        %371 = vmatpush1.xpose.msra.mxu0 0.0
        %372 = vmatprep.subr.mxu0 0.0
        %373 = vmatpush1.xpose.msra.mxu0 0.0
        %374 = vmatprep.subr.mxu0 0.0
        %375 = vmatpush1.xpose.msra.mxu0 0.0
        %376 = vmatprep.subr.mxu0 0.0
        %377 = vmatpush1.xpose.msra.mxu0 0.0
        %378 = vmatprep.subr.mxu0 0.0
        %379 = vmatpush1.xpose.msra.mxu0 0.0
        %380 = vmatprep.subr.mxu0 0.0
        %381 = vmatpush1.xpose.msra.mxu0 0.0
        %382 = vmatprep.subr.mxu0 0.0
        %383 = vmatpush1.xpose.msra.mxu0 0.0
        %384 = vmatprep.subr.mxu0 0.0
        %385 = vmatpush1.xpose.msra.mxu0 0.0
        %386 = vmatprep.subr.mxu0 0.0
        %387 = vmatpush1.xpose.msra.mxu0 0.0
        %388 = vmatprep.subr.mxu0 0.0
        %389 = vmatpush1.xpose.msra.mxu0 0.0
        %390 = vmatprep.subr.mxu0 0.0
        %391 = vmatpush1.xpose.msra.mxu0 0.0
        %392 = vmatprep.subr.mxu0 0.0
        %393 = vmatpush1.xpose.msra.mxu0 0.0
        %394 = vmatprep.subr.mxu0 0.0
        %395 = vmatpush1.xpose.msra.mxu0 0.0
        %396 = vmatprep.subr.mxu0 0.0
        %397 = vmatpush1.xpose.msra.mxu0 0.0
        %398 = vmatprep.subr.mxu0 0.0
        %399 = vmatpush1.xpose.msra.mxu0 0.0
        %400 = vmatprep.subr.mxu0 0.0
        %401 = vmatpush1.xpose.msra.mxu0 0.0
        %402 = vmatprep.subr.mxu0 0.0
        %403 = vmatpush1.xpose.msra.mxu0 0.0
        %404 = vmatprep.subr.mxu0 0.0
        %405 = vmatpush1.xpose.msra.mxu0 0.0
        %406 = vmatprep.subr.mxu0 0.0
        %407 = vmatpush1.xpose.msra.mxu0 0.0
        %408 = vmatprep.subr.mxu0 0.0
        %409 = vmatpush1.xpose.msra.mxu0 0.0
        %410 = vmatprep.subr.mxu0 0.0
        %411 = vmatpush1.xpose.msra.mxu0 0.0
        %412 = vmatprep.mubr.f32.mxu0 0.0
        %413 = vmatmul.mubr.f32.gmra.mrb[0].mxu0 %v343
        %v414 = vpop.f32.mrb[0].mxu0
        %v415 = vadd.f32 0.0, %v414
        %v416 = vpop.f32.mrb[0].mxu0
        %417 = vdwg.mxu0
        %v418 = vld [vmem:[%s327] sm:$0x1]
        %v419 = vlaneseq
        %v420 = vand.u32 %v419, 127
        %s421 = smul.u32 %s31, 8
        %v422 = vstv %s421
        %v423 = vadd.s32 %v420, %v422
        %v424 = vlaneseq
        %v425 = vshrl.u32 %v424, 7
        %v426 = vsub.s32 0, %v425
        %v427 = vrot.slane %v418, %v426
        %428 = vset.pattern.permute.xlu0 0
        %429 = vperm.xlu0 %428, %v427
        %v430 = vpop.permute.xlu0 %429
        %vm431 = vcmp.lt.s32.totalorder %v423, %v430
        %v432 = vsel %vm431, %v415, -1000000.0
        %v433 = vld [vmem:[#allocation2] sm:$0xff]
        %vm434 = vcmask 64512
        %v435 = vsel %vm434, %v432, -inf
        %436 = vmax.xlane.f32.xlu0 %v435
        %v437 = vpop.xlane.xlu0 %436
        %v438 = vmax.f32 %v433, %v437
        %v439 = vsub.f32 %v433, %v438
        %v440 = vmul.f32 %v439, 1.442695
        %v441 = vpow.pop %v440
        %443 = vset.pattern.permute.xlu0 0
        %444 = vperm.xlu0 %443, %v438
        %v445 = vpop.permute.xlu0 %444
        %v447 = vsub.f32 %v432, %v445
        %v448 = vmul.f32 %v447, 1.442695
        %v449 = vpow.pop %v448
        %v450 = vld [vmem:[#allocation3] sm:$0xff]
        %v451 = vmul.f32 %v441, %v450
        %v452 = vsel %vm434, %v449, 0.0
        %453 = vadd.xlane.f32.xlu0 %v452
        %v454 = vpop.xlane.xlu0 %453
        %v455 = vadd.f32 %v451, %v454
        %vm456 = vcmask 7168
        %457 = vst.msk [vmem:[#allocation3] sm:$0xff] %vm456, %v455
        %v459 = vsel %vm434, %v449, 0
        %461 = vmatprep.subr.mxu0 0.0
        %462 = vmatpush1.msra.mxu0 %v339
        %463 = vmatprep.subr.mxu0 0.0
        %464 = vmatpush1.msra.mxu0 0.0
        %465 = vmatprep.subr.mxu0 0.0
        %466 = vmatpush1.msra.mxu0 0.0
        %467 = vmatprep.subr.mxu0 0.0
        %468 = vmatpush1.msra.mxu0 0.0
        %469 = vmatprep.subr.mxu0 0.0
        %470 = vmatpush1.msra.mxu0 0.0
        %471 = vmatprep.subr.mxu0 0.0
        %472 = vmatpush1.msra.mxu0 0.0
        %473 = vmatprep.subr.mxu0 0.0
        %474 = vmatpush1.msra.mxu0 0.0
        %475 = vmatprep.subr.mxu0 0.0
        %476 = vmatpush1.msra.mxu0 0.0
        %477 = vmatprep.subr.mxu0 0.0
        %478 = vmatpush1.msra.mxu0 0.0
        %479 = vmatprep.subr.mxu0 0.0
        %480 = vmatpush1.msra.mxu0 0.0
        %481 = vmatprep.subr.mxu0 0.0
        %482 = vmatpush1.msra.mxu0 0.0
        %483 = vmatprep.subr.mxu0 0.0
        %484 = vmatpush1.msra.mxu0 0.0
        %485 = vmatprep.subr.mxu0 0.0
        %486 = vmatpush1.msra.mxu0 0.0
        %487 = vmatprep.subr.mxu0 0.0
        %488 = vmatpush1.msra.mxu0 0.0
        %489 = vmatprep.subr.mxu0 0.0
        %490 = vmatpush1.msra.mxu0 0.0
        %491 = vmatprep.subr.mxu0 0.0
        %492 = vmatpush1.msra.mxu0 0.0
        %493 = vmatprep.subr.mxu0 0.0
        %494 = vmatpush1.msra.mxu0 0.0
        %495 = vmatprep.subr.mxu0 0.0
        %496 = vmatpush1.msra.mxu0 0.0
        %497 = vmatprep.subr.mxu0 0.0
        %498 = vmatpush1.msra.mxu0 0.0
        %499 = vmatprep.subr.mxu0 0.0
        %500 = vmatpush1.msra.mxu0 0.0
        %501 = vmatprep.subr.mxu0 0.0
        %502 = vmatpush1.msra.mxu0 0.0
        %503 = vmatprep.subr.mxu0 0.0
        %504 = vmatpush1.msra.mxu0 0.0
        %505 = vmatprep.subr.mxu0 0.0
        %506 = vmatpush1.msra.mxu0 0.0
        %507 = vmatprep.subr.mxu0 0.0
        %508 = vmatpush1.msra.mxu0 0.0
        %509 = vmatprep.subr.mxu0 0.0
        %510 = vmatpush1.msra.mxu0 0.0
        %511 = vmatprep.subr.mxu0 0.0
        %512 = vmatpush1.msra.mxu0 0.0
        %513 = vmatprep.subr.mxu0 0.0
        %514 = vmatpush1.msra.mxu0 0.0
        %515 = vmatprep.subr.mxu0 0.0
        %516 = vmatpush1.msra.mxu0 0.0
        %517 = vmatprep.subr.mxu0 0.0
        %518 = vmatpush1.msra.mxu0 0.0
        %519 = vmatprep.subr.mxu0 0.0
        %520 = vmatpush1.msra.mxu0 0.0
        %521 = vmatprep.subr.mxu0 0.0
        %522 = vmatpush1.msra.mxu0 0.0
        %523 = vmatprep.subr.mxu0 0.0
        %524 = vmatpush1.msra.mxu0 0.0
        %525 = vmatprep.mubr.f32.mxu0 0.0
        %526 = vmatmul.mubr.f32.gmra.mrb[0].mxu0 %v459
        %v527 = vpop.f32.mrb[0].mxu0
        %v528 = vadd.f32 0.0, %v527
        %v529 = vpop.f32.mrb[0].mxu0
        %530 = vdwg.mxu0
        %v531 = vld [vmem:[#allocation4] sm:$0xff]
        %533 = vset.pattern.permute.xlu0 0
        %534 = vperm.xlu0 %533, %v441
        %v535 = vpop.permute.xlu0 %534
        %v537 = vmul.f32 %v535, %v531
        %v538 = vadd.f32 %v537, %v528
        %539 = vst.msk [vmem:[#allocation4] sm:$0xff] %vm341, %v538
        %540 = vst.msk [vmem:[#allocation2] sm:$0xff] %vm456, %v438
        // Predicated region
        $region53: #{tpu_custom_call.1} parent=35 // pred_check
          %p541 = pneg %p328
        $region54: #{tpu_custom_call.1} parent=35 // pred_check_branch
          %543 = sbr.rel (%p541) target = $region56
        $region55: #{tpu_custom_call.1} parent=35 // pred_region
          %v544 = vld [vmem:[#allocation3] sm:$0xff]
          %v545 = vrcp.pop %v544
          %v546 = vmul.f32 %v544, %v545
          %v547 = vsub.f32 2.0, %v546
          %v548 = vmul.f32 %v545, %v547
          %v549 = vld [vmem:[#allocation4] sm:$0xff]
          %551 = vset.pattern.permute.xlu0 0
          %552 = vperm.xlu0 %551, %v548
          %v553 = vpop.permute.xlu0 %552
          %v555 = vmul.f32 %v549, %v553
          %556 = vst.msk [vmem:[%s324] sm:$0xff] %vm341, %v555
        $region56: #{tpu_custom_call.1} parent=35 // pred_fallthru
          _
        %s557 = sand.u32 %s163, 1
        %s558 = scalar_lea.sflag [#allocation7], %s557
        %s559 = sand.u32 %s163, 1
        %s560 = smul.addr %s559, 8
        %s561 = scalar_lea.vmem [#allocation11], %s560
        // Predicated region
        $region57: #{tpu_custom_call.1} parent=35 // pred_check
          %p562 = pneg %p173
        $region58: #{tpu_custom_call.1} parent=35 // pred_check_branch
          %564 = sbr.rel (%p562) target = $region60
        $region59: #{tpu_custom_call.1} parent=35 // pred_region
          %s566 = ssub.s32 128, 128
          %567 = vsyncadd %s558, %s566
          %s568 = sadd.s32 %s30, %s29
          %s569 = smul.addr %s568, 128
          %s570 = scalar_lea.hbm %s4, %s569
          %s572 = sshll.u32 %s561, 4
          %s573 = int_to_ptr.vmem [resolvable:$true] %s572
          %575 = dma.vmem_to_hbm [thread:$0]  %s573, 128, %s570, %s558
        $region60: #{tpu_custom_call.1} parent=35 // pred_fallthru
          _
      $region36: #{tpu_custom_call.1} parent=5 // pred_fallthru
        _
      %p576 = scmp.le.s32.totalorder 2, %s19
      // Predicated region
      $region61: #{tpu_custom_call.1} parent=5 // pred_check
        %p577 = pneg %p576
      $region62: #{tpu_custom_call.1} parent=5 // pred_check_branch
        %579 = sbr.rel (%p577) target = $region64
      $region63: #{tpu_custom_call.1} parent=5 // pred_region
        %s580 = ssub.s32 %s19, 2
        // Predicated region
        $region65: #{tpu_custom_call.1} parent=63 // pred_check
          %p581 = pneg %p179
        $region66: #{tpu_custom_call.1} parent=63 // pred_check_branch
          %583 = sbr.rel (%p581) target = $region68
        $region67: #{tpu_custom_call.1} parent=63 // pred_region
          %s584 = sand.u32 %s164, 1
          %s585 = scalar_lea.sflag [#allocation7], %s584
          %s586 = sand.u32 %s164, 1
          %s587 = smul.addr %s586, 8
          %s588 = scalar_lea.vmem [#allocation11], %s587
          %589 = dma.done %s585, 128
        $region68: #{tpu_custom_call.1} parent=63 // pred_fallthru
          _
      $region64: #{tpu_custom_call.1} parent=5 // pred_fallthru
        _
    $region6: #{tpu_custom_call.1} parent=1 // loop_footer
      %s23 = sadd.s32 1, %s19
    $region7: #{tpu_custom_call.1} parent=1 // loop_footer_branch
      %18 = sbr.rel target = $region3
    $region8: #{tpu_custom_call.1} parent=1 // loop_exit
      _
    %590 = vsyncpa [#allocation6], 1
    %s591 = scalar_lea.sflag [#allocation6], 1
    %592 = vsyncpa %s591, 1
    %593 = vsyncpa [#allocation9], 1
    %s594 = scalar_lea.sflag [#allocation9], 1
    %595 = vsyncpa %s594, 1
    %596 = vsyncpa [#allocation7], 1
    %s597 = scalar_lea.sflag [#allocation7], 1
    %598 = vsyncpa %s597, 1

</llo_original>
